<compile_context>
chip_gen: v5e
topology: v5e:2x2
jax: 0.10.0
libtpu: 0.0.40
codegen_flags: <defaults>
</compile_context>

<pallas_src>
import functools

import jax
import jax.numpy as jnp
from jax import lax
from jax.experimental import pallas as pl
from jax.experimental.pallas import tpu as pltpu


_LANE = 128
_DEFAULT_MAX_TILE = 512
_VMEM_BUDGET = 40 * 1024 * 1024        # conservative working-set budget (v7x-safe)
_VMEM_LIMIT_FLOOR = 32 * 1024 * 1024   # default scoped limit
_VMEM_LIMIT_CEIL = 60 * 1024 * 1024    # stay under v7x's 64 MiB physical VMEM


def _round_up(x, m):
    return ((x + m - 1) // m) * m


def _choose_tile(dim, max_tile=_DEFAULT_MAX_TILE):
    """Largest 128-multiple tile <= max_tile whose padding waste is <= ~12.5%."""
    aligned = _round_up(max(dim, 1), _LANE)
    tile = min(max_tile, aligned)
    while tile > _LANE and _round_up(dim, tile) * 8 > aligned * 9:
        tile //= 2
    return tile


def _pad2d(a, rows, cols):
    pr, pc = rows - a.shape[0], cols - a.shape[1]
    if pr == 0 and pc == 0:
        return a
    return jnp.pad(a, ((0, pr), (0, pc)))


def _pad1d(a, n):
    if a.shape[0] == n:
        return a
    return jnp.pad(a, (0, n - a.shape[0]))


def _vmem_limit(estimate_bytes):
    return int(min(_VMEM_LIMIT_CEIL,
                   max(_VMEM_LIMIT_FLOOR, estimate_bytes + (4 << 20))))


# ---------------------------------------------------------------------------
# Kernel helpers
# ---------------------------------------------------------------------------
def _weff_tile_f32(w, la, lb, mla, mlb, inv_rank, inv_srank):
    """w_eff = w * (mlb @ mla) / scaling_rank + (lb @ la) / rank   (f32)."""
    scale = jnp.dot(mlb.astype(jnp.float32), mla.astype(jnp.float32),
                    preferred_element_type=jnp.float32) * inv_srank
    delta = jnp.dot(lb.astype(jnp.float32), la.astype(jnp.float32),
                    preferred_element_type=jnp.float32) * inv_rank
    return w.astype(jnp.float32) * scale + delta


def _xwt(x, w):
    # x[m,k] contracted with w[n,k] along k (F.linear semantics), f32 accumulate.
    return lax.dot_general(x, w, dimension_numbers=(((1,), (1,)), ((), ())),
                           preferred_element_type=jnp.float32)


# ---------------------------------------------------------------------------
# Stage 1: materialize the effective weight once (mem-bound, big blocks)
# ---------------------------------------------------------------------------
def _weff_kernel(w_ref, la_ref, lb_ref, mla_ref, mlb_ref, o_ref, *,
                 inv_rank, inv_srank):
    o_ref[...] = _weff_tile_f32(w_ref[...], la_ref[...], lb_ref[...],
                                mla_ref[...], mlb_ref[...],
                                inv_rank, inv_srank).astype(o_ref.dtype)


# ---------------------------------------------------------------------------
# Stage 2: y = x @ w_eff.T + bias
# ---------------------------------------------------------------------------
def _matmul_bias_kernel(x_ref, w_ref, b_ref, o_ref, acc_ref):
    k = pl.program_id(2)

    @pl.when(k == 0)
    def _():
        acc_ref[...] = jnp.zeros_like(acc_ref)

    acc_ref[...] += _xwt(x_ref[...], w_ref[...])

    @pl.when(k == pl.num_programs(2) - 1)
    def _():
        o_ref[...] = (acc_ref[...]
                      + b_ref[...].astype(jnp.float32)).astype(o_ref.dtype)


def _matmul_bias_fullk_kernel(x_ref, w_ref, b_ref, o_ref):
    acc = _xwt(x_ref[...], w_ref[...])
    o_ref[...] = (acc + b_ref[...].astype(jnp.float32)).astype(o_ref.dtype)


# ---------------------------------------------------------------------------
# Fused path (small M): build the w_eff tile inside the matmul kernel
# ---------------------------------------------------------------------------
def _fused_kernel(x_ref, w_ref, la_ref, lb_ref, mla_ref, mlb_ref, b_ref, o_ref,
                  acc_ref, *, inv_rank, inv_srank):
    k = pl.program_id(2)

    @pl.when(k == 0)
    def _():
        acc_ref[...] = jnp.zeros_like(acc_ref)

    weff = _weff_tile_f32(w_ref[...], la_ref[...], lb_ref[...],
                          mla_ref[...], mlb_ref[...], inv_rank, inv_srank)
    acc_ref[...] += _xwt(x_ref[...], weff.astype(x_ref.dtype))

    @pl.when(k == pl.num_programs(2) - 1)
    def _():
        o_ref[...] = (acc_ref[...]
                      + b_ref[...].astype(jnp.float32)).astype(o_ref.dtype)


def _fused_fullk_kernel(x_ref, w_ref, la_ref, lb_ref, mla_ref, mlb_ref, b_ref,
                        o_ref, *, inv_rank, inv_srank):
    weff = _weff_tile_f32(w_ref[...], la_ref[...], lb_ref[...],
                          mla_ref[...], mlb_ref[...], inv_rank, inv_srank)
    acc = _xwt(x_ref[...], weff.astype(x_ref.dtype))
    o_ref[...] = (acc + b_ref[...].astype(jnp.float32)).astype(o_ref.dtype)


# ---------------------------------------------------------------------------
# Wrapper: prepare (once) / apply (per call)
# ---------------------------------------------------------------------------
def lora_linear_prepare(weight, bias, lora_a, lora_b, multi_lora_a,
                        multi_lora_b, *, rank, scaling_rank,
                        max_tile=_DEFAULT_MAX_TILE):
    """Pad LoRA parameters once (hoisted out of the per-call hot path)."""
    assert rank > 0 and scaling_rank > 0, "general branch only"
    N, K = weight.shape
    tile_n = _choose_tile(N, max_tile)
    tile_k = _choose_tile(K, max_tile)
    Np = _round_up(N, tile_n)
    Kp = _round_up(K, tile_k)
    # Zero padding is mathematically inert: padded lora rows/cols are zero so
    # w_eff is zero on padded (n,k); padded x columns contribute nothing.
    return dict(
        N=N, K=K, Np=Np, Kp=Kp, tile_n=tile_n, tile_k=tile_k,
        rank=rank, scaling_rank=scaling_rank,
        weight=_pad2d(weight, Np, Kp),
        bias=_pad1d(bias, Np).reshape(1, Np),
        lora_a=_pad2d(lora_a, rank, Kp),
        lora_b=_pad2d(lora_b, Np, rank),
        multi_lora_a=_pad2d(multi_lora_a, scaling_rank, Kp),
        multi_lora_b=_pad2d(multi_lora_b, Np, scaling_rank),
    )


def _materialize_weff(p, out_dtype):
    Np, Kp, tile_n = p["Np"], p["Kp"], p["tile_n"]
    in_bytes = jnp.dtype(p["weight"].dtype).itemsize
    out_bytes = jnp.dtype(out_dtype).itemsize
    # Stage 1 is purely memory-bound: use (tile_n, full Kp) blocks when they
    # fit the VMEM budget (double-buffered in/out + f32 temps).
    per_elem = 2 * in_bytes + 2 * out_bytes + 12
    tile_k = Kp if tile_n * Kp * per_elem <= _VMEM_BUDGET else p["tile_k"]
    est = tile_n * tile_k * per_elem
    inv_rank = 1.0 / p["rank"]
    inv_srank = 1.0 / p["scaling_rank"]
    return pl.pallas_call(
        functools.partial(_weff_kernel, inv_rank=inv_rank, inv_srank=inv_srank),
        out_shape=jax.ShapeDtypeStruct((Np, Kp), out_dtype),
        grid_spec=pltpu.PrefetchScalarGridSpec(
            num_scalar_prefetch=0,
            grid=(Np // tile_n, Kp // tile_k),
            in_specs=[
                pl.BlockSpec((tile_n, tile_k), lambda n, k: (n, k)),            # weight
                pl.BlockSpec((p["rank"], tile_k), lambda n, k: (0, k)),         # lora_a
                pl.BlockSpec((tile_n, p["rank"]), lambda n, k: (n, 0)),         # lora_b
                pl.BlockSpec((p["scaling_rank"], tile_k), lambda n, k: (0, k)),  # mla
                pl.BlockSpec((tile_n, p["scaling_rank"]), lambda n, k: (n, 0)),  # mlb
            ],
            out_specs=pl.BlockSpec((tile_n, tile_k), lambda n, k: (n, k)),
        ),
        compiler_params=pltpu.CompilerParams(
            dimension_semantics=("parallel", "parallel"),
            vmem_limit_bytes=_vmem_limit(est)),
    )(p["weight"], p["lora_a"], p["lora_b"],
      p["multi_lora_a"], p["multi_lora_b"])


def lora_linear_apply(x, p, *, compute_in_bf16=False, fuse_small_m=True,
                      collapse_k=None, max_tile_m=_DEFAULT_MAX_TILE):
    """x: [..., in_features] -> [..., out_features] (output dtype == x.dtype)."""
    N, K, Np, Kp = p["N"], p["K"], p["Np"], p["Kp"]
    tile_n, tile_k = p["tile_n"], p["tile_k"]
    orig_shape = x.shape
    assert orig_shape[-1] == K

    x2d = x.reshape(-1, K)
    M = x2d.shape[0]
    out_dtype = x.dtype
    compute_dtype = jnp.bfloat16 if compute_in_bf16 else x.dtype
    c_bytes = jnp.dtype(compute_dtype).itemsize
    o_bytes = jnp.dtype(out_dtype).itemsize

    # Adaptive tile_m: decode-sized batches are not padded up to 512 rows.
    tile_m = _choose_tile(M, max_tile_m)
    Mp = _round_up(M, tile_m)
    num_m = Mp // tile_m
    num_n = Np // tile_n

    # v7x has 2 TensorCores: keep >= 2 parallel tiles when the shape allows it.
    if num_m * num_n == 1 and tile_n >= 256 and tile_n % 256 == 0:
        tile_n //= 2
        num_n = Np // tile_n

    x_p = _pad2d(x2d, Mp, Kp)
    if x_p.dtype != compute_dtype:
        x_p = x_p.astype(compute_dtype)

    def _working_set(tk_):
        return (2 * tile_m * tk_ * c_bytes          # x blocks (double-buffered)
                + 2 * tile_n * tk_ * 4              # weight / w_eff blocks (worst case f32)
                + 2 * tile_m * tile_n * o_bytes     # out blocks
                + tile_m * tile_n * 4               # f32 accumulator / result
                + tile_n * tk_ * 4)                 # fused-path f32 w_eff temp

    # Collapse the K grid axis to one full-K block when it fits VMEM (v7x-safe).
    if collapse_k is None:
        collapse_k = _working_set(Kp) <= _VMEM_BUDGET
    tk = Kp if collapse_k else tile_k
    num_k = Kp // tk

    # Fuse w_eff construction into the matmul for small M (decode / small batch):
    # avoids the extra Np*Kp HBM write+read of a materialized effective weight.
    fuse = fuse_small_m and num_m <= 2

    inv_rank = 1.0 / p["rank"]
    inv_srank = 1.0 / p["scaling_rank"]

    grid = (num_m, num_n, num_k)
    x_spec = pl.BlockSpec((tile_m, tk), lambda i, j, k: (i, k))
    w_spec = pl.BlockSpec((tile_n, tk), lambda i, j, k: (j, k))
    b_spec = pl.BlockSpec((1, tile_n), lambda i, j, k: (0, j))
    o_spec = pl.BlockSpec((tile_m, tile_n), lambda i, j, k: (i, j))

    if fuse:
        in_specs = [
            x_spec,
            w_spec,                                                        # raw weight
            pl.BlockSpec((p["rank"], tk), lambda i, j, k: (0, k)),         # lora_a
            pl.BlockSpec((tile_n, p["rank"]), lambda i, j, k: (j, 0)),     # lora_b
            pl.BlockSpec((p["scaling_rank"], tk), lambda i, j, k: (0, k)),  # mla
            pl.BlockSpec((tile_n, p["scaling_rank"]), lambda i, j, k: (j, 0)),  # mlb
            b_spec,
        ]
        args = (x_p, p["weight"], p["lora_a"], p["lora_b"],
                p["multi_lora_a"], p["multi_lora_b"], p["bias"])
        if collapse_k:
            kern = functools.partial(_fused_fullk_kernel,
                                     inv_rank=inv_rank, inv_srank=inv_srank)
            scratch = []
        else:
            kern = functools.partial(_fused_kernel,
                                     inv_rank=inv_rank, inv_srank=inv_srank)
            scratch = [pltpu.VMEM((tile_m, tile_n), jnp.float32)]
    else:
        weff = _materialize_weff(p, compute_dtype)
        in_specs = [x_spec, w_spec, b_spec]
        args = (x_p, weff, p["bias"])
        if collapse_k:
            kern = _matmul_bias_fullk_kernel
            scratch = []
        else:
            kern = _matmul_bias_kernel
            scratch = [pltpu.VMEM((tile_m, tile_n), jnp.float32)]

    cost = pl.CostEstimate(
        flops=2 * Mp * Np * Kp,
        transcendentals=0,
        bytes_accessed=(Mp * Kp + Np * Kp) * c_bytes + Mp * Np * o_bytes)

    out_p = pl.pallas_call(
        kern,
        out_shape=jax.ShapeDtypeStruct((Mp, Np), out_dtype),
        grid_spec=pltpu.PrefetchScalarGridSpec(
            num_scalar_prefetch=0,
            grid=grid,
            in_specs=in_specs,
            out_specs=o_spec,
            scratch_shapes=scratch,
        ),
        compiler_params=pltpu.CompilerParams(
            dimension_semantics=("parallel", "parallel", "arbitrary"),
            vmem_limit_bytes=_vmem_limit(_working_set(tk))),
        cost_estimate=cost,
    )(*args)

    out = out_p[:M, :N]
    return out.reshape(*orig_shape[:-1], N)


def lora_linear(x, weight, bias, lora_a, lora_b, multi_lora_a, multi_lora_b,
                *, rank, scaling_rank, **kwargs):
    p = lora_linear_prepare(weight, bias, lora_a, lora_b, multi_lora_a,
                            multi_lora_b, rank=rank, scaling_rank=scaling_rank)
    return lora_linear_apply(x, p, **kwargs)


def reference(x, weight, bias, lora_a, lora_b, multi_lora_a, multi_lora_b,
              *, rank, scaling_rank):
    w = weight * (multi_lora_b @ multi_lora_a) / scaling_rank
    w = w + (lora_b @ lora_a) / rank
    return jnp.einsum("...i,oi->...o", x, w) + bias


if __name__ == "__main__":
    # Small, deterministic problem consistent with the module's __init__.
    batch, seq = 2, 8
    in_features, out_features = 32, 32
    rank, scaling_rank = 4, 2
    init_scale = -0.05  # negative -> lora_b / multi_lora_b are random-init

    key = jax.random.PRNGKey(0)
    ks = jax.random.split(key, 7)

    x = jax.random.normal(ks[0], (batch, seq, in_features), jnp.float32)
    weight = jax.random.normal(ks[1], (out_features, in_features), jnp.float32) * 0.1
    bias = jax.random.normal(ks[2], (out_features,), jnp.float32) * 0.1
    lora_a = jax.random.normal(ks[3], (rank, in_features), jnp.float32) * init_scale
    lora_b = jax.random.normal(ks[4], (out_features, rank), jnp.float32) * init_scale
    multi_lora_a = (jnp.ones((scaling_rank, in_features), jnp.float32)
                    + jax.random.normal(ks[5], (scaling_rank, in_features),
                                        jnp.float32) * init_scale)
    multi_lora_b = (jnp.ones((out_features, scaling_rank), jnp.float32)
                    + jax.random.normal(ks[6], (out_features, scaling_rank),
                                        jnp.float32) * init_scale)

    ref = reference(x, weight, bias, lora_a, lora_b, multi_lora_a, multi_lora_b,
                    rank=rank, scaling_rank=scaling_rank)

    # Parameters padded once, out of the per-call hot path.
    p = lora_linear_prepare(weight, bias, lora_a, lora_b, multi_lora_a,
                            multi_lora_b, rank=rank, scaling_rank=scaling_rank)

    # 1) default: fused small-M path, full-K block
    out = jax.block_until_ready(lora_linear_apply(x, p))
    assert out.shape == (batch, seq, out_features)
    assert out.dtype == x.dtype
    assert jnp.allclose(out, ref, atol=1e-4, rtol=1e-4), "fused full-K mismatch"

    # 2) two-stage path (w_eff materialized once, then matmul)
    out2 = jax.block_until_ready(lora_linear_apply(x, p, fuse_small_m=False))
    assert jnp.allclose(out2, ref, atol=1e-4, rtol=1e-4), "two-stage mismatch"

    # 3) K-loop accumulator paths (forced)
    out3 = jax.block_until_ready(lora_linear_apply(x, p, collapse_k=False))
    assert jnp.allclose(out3, ref, atol=1e-4, rtol=1e-4), "fused K-loop mismatch"
    out4 = jax.block_until_ready(
        lora_linear_apply(x, p, fuse_small_m=False, collapse_k=False))
    assert jnp.allclose(out4, ref, atol=1e-4, rtol=1e-4), "two-stage K-loop mismatch"

    # 4) bf16 MXU path (f32 output, f32 accumulation, looser tolerance)
    out5 = jax.block_until_ready(lora_linear_apply(x, p, compute_in_bf16=True))
    assert out5.dtype == x.dtype
    assert jnp.allclose(out5, ref, atol=5e-2, rtol=5e-2), "bf16 path mismatch"

    print("KERNEL_OK")
</pallas_src>

<mosaic_0001>
module attributes {stable_mosaic.version = 11 : i64} {
  func.func @_fused_fullk_kernel(%arg0: i32, %arg1: i32, %arg2: i32, %arg3: memref<128x128xf32, #tpu.memory_space<vmem>>, %arg4: memref<128x128xf32, #tpu.memory_space<vmem>>, %arg5: memref<4x128xf32, #tpu.memory_space<vmem>>, %arg6: memref<128x4xf32, #tpu.memory_space<vmem>>, %arg7: memref<2x128xf32, #tpu.memory_space<vmem>>, %arg8: memref<128x2xf32, #tpu.memory_space<vmem>>, %arg9: memref<1x128xf32, #tpu.memory_space<vmem>>, %arg10: memref<128x128xf32, #tpu.memory_space<vmem>>) attributes {dimension_semantics = [#tpu.dimension_semantics<parallel>, #tpu.dimension_semantics<parallel>, #tpu.dimension_semantics<arbitrary>], iteration_bounds = array<i64: 1, 1, 1>, scalar_prefetch = 0 : i64, scratch_operands = 0 : i64, tpu.core_type = #tpu.core_type<tc>, window_params = [{transform_indices = @transform_0, window_bounds = array<i64: 128, 128>}, {transform_indices = @transform_1, window_bounds = array<i64: 128, 128>}, {transform_indices = @transform_2, window_bounds = array<i64: 4, 128>}, {transform_indices = @transform_3, window_bounds = array<i64: 128, 4>}, {transform_indices = @transform_4, window_bounds = array<i64: 2, 128>}, {transform_indices = @transform_5, window_bounds = array<i64: 128, 2>}, {transform_indices = @transform_6, window_bounds = array<i64: 1, 128>}, {transform_indices = @transform_7, window_bounds = array<i64: 128, 128>}]} {
    %c0 = arith.constant 0 : index
    %c0_0 = arith.constant 0 : index
    %0 = vector.load %arg4[%c0, %c0_0] : memref<128x128xf32, #tpu.memory_space<vmem>>, vector<128x128xf32>
    %c0_1 = arith.constant 0 : index
    %c0_2 = arith.constant 0 : index
    %1 = vector.load %arg5[%c0_1, %c0_2] : memref<4x128xf32, #tpu.memory_space<vmem>>, vector<4x128xf32>
    %c0_3 = arith.constant 0 : index
    %c0_4 = arith.constant 0 : index
    %2 = vector.load %arg6[%c0_3, %c0_4] : memref<128x4xf32, #tpu.memory_space<vmem>>, vector<128x4xf32>
    %c0_5 = arith.constant 0 : index
    %c0_6 = arith.constant 0 : index
    %3 = vector.load %arg7[%c0_5, %c0_6] : memref<2x128xf32, #tpu.memory_space<vmem>>, vector<2x128xf32>
    %c0_7 = arith.constant 0 : index
    %c0_8 = arith.constant 0 : index
    %4 = vector.load %arg8[%c0_7, %c0_8] : memref<128x2xf32, #tpu.memory_space<vmem>>, vector<128x2xf32>
    %cst = arith.constant dense<0.000000e+00> : vector<128x128xf32>
    %5 = tpu.matmul %4, %3, %cst {dimension_numbers = #tpu.dot_dimension_numbers<[1], [0], [0], [1], [0, 0, 1, 1], [], []>} : vector<128x2xf32>, vector<2x128xf32>, vector<128x128xf32> -> vector<128x128xf32>
    %cst_9 = arith.constant 5.000000e-01 : f32
    %6 = vector.broadcast %cst_9 : f32 to vector<128x128xf32>
    %7 = arith.mulf %5, %6 : vector<128x128xf32>
    %cst_10 = arith.constant dense<0.000000e+00> : vector<128x128xf32>
    %8 = tpu.matmul %2, %1, %cst_10 {dimension_numbers = #tpu.dot_dimension_numbers<[1], [0], [0], [1], [0, 0, 1, 1], [], []>} : vector<128x4xf32>, vector<4x128xf32>, vector<128x128xf32> -> vector<128x128xf32>
    %cst_11 = arith.constant 2.500000e-01 : f32
    %9 = vector.broadcast %cst_11 : f32 to vector<128x128xf32>
    %10 = arith.mulf %8, %9 : vector<128x128xf32>
    %11 = arith.mulf %0, %7 : vector<128x128xf32>
    %12 = arith.addf %11, %10 : vector<128x128xf32>
    %c0_12 = arith.constant 0 : index
    %c0_13 = arith.constant 0 : index
    %13 = vector.load %arg3[%c0_12, %c0_13] : memref<128x128xf32, #tpu.memory_space<vmem>>, vector<128x128xf32>
    %cst_14 = arith.constant dense<0.000000e+00> : vector<128x128xf32>
    %14 = tpu.matmul %13, %12, %cst_14 {dimension_numbers = #tpu.dot_dimension_numbers<[1], [1], [0], [0], [0, 0, 1, 0], [], []>} : vector<128x128xf32>, vector<128x128xf32>, vector<128x128xf32> -> vector<128x128xf32>
    %c0_15 = arith.constant 0 : index
    %c0_16 = arith.constant 0 : index
    %15 = vector.load %arg9[%c0_15, %c0_16] : memref<1x128xf32, #tpu.memory_space<vmem>>, vector<1x128xf32>
    %16 = vector.broadcast %15 : vector<1x128xf32> to vector<128x128xf32>
    %17 = arith.addf %14, %16 : vector<128x128xf32>
    %c0_17 = arith.constant 0 : index
    %c0_18 = arith.constant 0 : index
    %18 = vector.load %arg10[%c0_17, %c0_18] : memref<128x128xf32, #tpu.memory_space<vmem>>, vector<128x128xf32>
    tpu.vector_store %arg10[%c0_17, %c0_18], %17 {strides = array<i32>} : memref<128x128xf32, #tpu.memory_space<vmem>>, vector<128x128xf32>,
    return
  }
  func.func @transform_0(%arg0: i32, %arg1: i32, %arg2: i32) -> (i32, i32) {
    %c0_i32 = arith.constant 0 : i32
    return %arg0, %arg2 : i32, i32
  }
  func.func @transform_1(%arg0: i32, %arg1: i32, %arg2: i32) -> (i32, i32) {
    %c0_i32 = arith.constant 0 : i32
    return %arg1, %arg2 : i32, i32
  }
  func.func @transform_2(%arg0: i32, %arg1: i32, %arg2: i32) -> (i32, i32) {
    %c0_i32 = arith.constant 0 : i32
    %c0_i32_0 = arith.constant 0 : i32
    return %c0_i32, %arg2 : i32, i32
  }
  func.func @transform_3(%arg0: i32, %arg1: i32, %arg2: i32) -> (i32, i32) {
    %c0_i32 = arith.constant 0 : i32
    %c0_i32_0 = arith.constant 0 : i32
    return %arg1, %c0_i32 : i32, i32
  }
  func.func @transform_4(%arg0: i32, %arg1: i32, %arg2: i32) -> (i32, i32) {
    %c0_i32 = arith.constant 0 : i32
    %c0_i32_0 = arith.constant 0 : i32
    return %c0_i32, %arg2 : i32, i32
  }
  func.func @transform_5(%arg0: i32, %arg1: i32, %arg2: i32) -> (i32, i32) {
    %c0_i32 = arith.constant 0 : i32
    %c0_i32_0 = arith.constant 0 : i32
    return %arg1, %c0_i32 : i32, i32
  }
  func.func @transform_6(%arg0: i32, %arg1: i32, %arg2: i32) -> (i32, i32) {
    %c0_i32 = arith.constant 0 : i32
    %c0_i32_0 = arith.constant 0 : i32
    return %c0_i32, %arg1 : i32, i32
  }
  func.func @transform_7(%arg0: i32, %arg1: i32, %arg2: i32) -> (i32, i32) {
    %c0_i32 = arith.constant 0 : i32
    return %arg0, %arg1 : i32, i32
  }
}

</mosaic_0001>

<llo_original>
// kernel: tpu_custom_call.1
$region0: #{tpu_custom_call.1}
  #allocation0 [shape = 'u32[]', space=smem, size = 0x4, offset = 0x4, fixed_abs, tag = 'smem constant byte address 0x4 - core index']
  #allocation1 [shape = 'u32[72,128]{1,0:T(1,128)}', space=vmem, size = 0x9000, scoped, tag = 'internal scratch']
  %s0 = inlined_call_operand.vmem [shape: f32[128,128], index: 0, kind: input, shape index: {}]
  %s1 = inlined_call_operand.vmem [shape: f32[128,128], index: 1, kind: input, shape index: {}]
  %s2 = inlined_call_operand.vmem [shape: f32[4,128], index: 2, kind: input, shape index: {}]
  %s3 = inlined_call_operand.vmem [shape: f32[128,4], index: 3, kind: input, shape index: {}]
  %s4 = inlined_call_operand.vmem [shape: f32[2,128], index: 4, kind: input, shape index: {}]
  %s5 = inlined_call_operand.vmem [shape: f32[128,2], index: 5, kind: input, shape index: {}]
  %s6 = inlined_call_operand.vmem [shape: f32[1,128], index: 6, kind: input, shape index: {}]
  %s7 = inlined_call_operand.hbm [shape: f32[128,128], index: 7, kind: output, shape index: {}]
  %s8 = sld [smem:[#allocation0]]
  $region38: #{tpu_custom_call.1} parent=0
    _
  %s10 = ssub.s32 1, %s8
  %s11 = scalar_select 0, %s10, %s8
  $region1: #{tpu_custom_call.1} parent=0
    #allocation2 [shape = 'u8[65536]{0}', space=vmem, size = 0x10000, scoped, tag = 'output window, operand 0, single buffered']
    #allocation3 [shape = 's32[1]{0}', space=sflag, size = 0x4, scoped, tag = 'scoped memory for tpu_custom_call.1']
    %12 = vsyncpa [#allocation3], 0
    // Predicated region
    $region2: #{tpu_custom_call.1} parent=1 // pred_check
      _
    $region3: #{tpu_custom_call.1} parent=1 // pred_check_branch
      %14 = sbr.rel (0) target = $region5
    $region4: #{tpu_custom_call.1} parent=1 // pred_region
      _
    $region5: #{tpu_custom_call.1} parent=1 // pred_fallthru
      _
    // Predicated region
    $region6: #{tpu_custom_call.1} parent=1 // pred_check
      _
    $region7: #{tpu_custom_call.1} parent=1 // pred_check_branch
      %16 = sbr.rel (0) target = $region9
    $region8: #{tpu_custom_call.1} parent=1 // pred_region
      _
    $region9: #{tpu_custom_call.1} parent=1 // pred_fallthru
      _
    // Predicated region
    $region10: #{tpu_custom_call.1} parent=1 // pred_check
      _
    $region11: #{tpu_custom_call.1} parent=1 // pred_check_branch
      %18 = sbr.rel (0) target = $region13
    $region12: #{tpu_custom_call.1} parent=1 // pred_region
      _
    $region13: #{tpu_custom_call.1} parent=1 // pred_fallthru
      _
    // Predicated region
    $region14: #{tpu_custom_call.1} parent=1 // pred_check
      _
    $region15: #{tpu_custom_call.1} parent=1 // pred_check_branch
      %20 = sbr.rel (0) target = $region17
    $region16: #{tpu_custom_call.1} parent=1 // pred_region
      _
    $region17: #{tpu_custom_call.1} parent=1 // pred_fallthru
      _
    // Predicated region
    $region18: #{tpu_custom_call.1} parent=1 // pred_check
      _
    $region19: #{tpu_custom_call.1} parent=1 // pred_check_branch
      %22 = sbr.rel (0) target = $region21
    $region20: #{tpu_custom_call.1} parent=1 // pred_region
      _
    $region21: #{tpu_custom_call.1} parent=1 // pred_fallthru
      _
    // Predicated region
    $region22: #{tpu_custom_call.1} parent=1 // pred_check
      _
    $region23: #{tpu_custom_call.1} parent=1 // pred_check_branch
      %24 = sbr.rel (0) target = $region25
    $region24: #{tpu_custom_call.1} parent=1 // pred_region
      _
    $region25: #{tpu_custom_call.1} parent=1 // pred_fallthru
      _
    // Predicated region
    $region26: #{tpu_custom_call.1} parent=1 // pred_check
      _
    $region27: #{tpu_custom_call.1} parent=1 // pred_check_branch
      %26 = sbr.rel (0) target = $region29
    $region28: #{tpu_custom_call.1} parent=1 // pred_region
      _
    $region29: #{tpu_custom_call.1} parent=1 // pred_fallthru
      _
    %v27 = vld [vmem:[%s1] sm:$0xff]
    %v28 = vld [vmem:[%s1 + $0x8] sm:$0xff]
    %v29 = vld [vmem:[%s1 + $0x10] sm:$0xff]
    %v30 = vld [vmem:[%s1 + $0x18] sm:$0xff]
    %v31 = vld [vmem:[%s1 + $0x20] sm:$0xff]
    %v32 = vld [vmem:[%s1 + $0x28] sm:$0xff]
    %v33 = vld [vmem:[%s1 + $0x30] sm:$0xff]
    %v34 = vld [vmem:[%s1 + $0x38] sm:$0xff]
    %v35 = vld [vmem:[%s1 + $0x40] sm:$0xff]
    %v36 = vld [vmem:[%s1 + $0x48] sm:$0xff]
    %v37 = vld [vmem:[%s1 + $0x50] sm:$0xff]
    %v38 = vld [vmem:[%s1 + $0x58] sm:$0xff]
    %v39 = vld [vmem:[%s1 + $0x60] sm:$0xff]
    %v40 = vld [vmem:[%s1 + $0x68] sm:$0xff]
    %v41 = vld [vmem:[%s1 + $0x70] sm:$0xff]
    %v42 = vld [vmem:[%s1 + $0x78] sm:$0xff]
    %v43 = vld [vmem:[%s2] sm:$0xf]
    %v44 = vld [vmem:[%s3] sm:$0xff]
    %v45 = vld [vmem:[%s3 + $0x8] sm:$0xff]
    %v46 = vld [vmem:[%s3 + $0x10] sm:$0xff]
    %v47 = vld [vmem:[%s3 + $0x18] sm:$0xff]
    %v48 = vld [vmem:[%s3 + $0x20] sm:$0xff]
    %v49 = vld [vmem:[%s3 + $0x28] sm:$0xff]
    %v50 = vld [vmem:[%s3 + $0x30] sm:$0xff]
    %v51 = vld [vmem:[%s3 + $0x38] sm:$0xff]
    %v52 = vld [vmem:[%s3 + $0x40] sm:$0xff]
    %v53 = vld [vmem:[%s3 + $0x48] sm:$0xff]
    %v54 = vld [vmem:[%s3 + $0x50] sm:$0xff]
    %v55 = vld [vmem:[%s3 + $0x58] sm:$0xff]
    %v56 = vld [vmem:[%s3 + $0x60] sm:$0xff]
    %v57 = vld [vmem:[%s3 + $0x68] sm:$0xff]
    %v58 = vld [vmem:[%s3 + $0x70] sm:$0xff]
    %v59 = vld [vmem:[%s3 + $0x78] sm:$0xff]
    %v60 = vld [vmem:[%s4] sm:$0x3]
    %v61 = vld [vmem:[%s5] sm:$0xff]
    %v62 = vld [vmem:[%s5 + $0x8] sm:$0xff]
    %v63 = vld [vmem:[%s5 + $0x10] sm:$0xff]
    %v64 = vld [vmem:[%s5 + $0x18] sm:$0xff]
    %v65 = vld [vmem:[%s5 + $0x20] sm:$0xff]
    %v66 = vld [vmem:[%s5 + $0x28] sm:$0xff]
    %v67 = vld [vmem:[%s5 + $0x30] sm:$0xff]
    %v68 = vld [vmem:[%s5 + $0x38] sm:$0xff]
    %v69 = vld [vmem:[%s5 + $0x40] sm:$0xff]
    %v70 = vld [vmem:[%s5 + $0x48] sm:$0xff]
    %v71 = vld [vmem:[%s5 + $0x50] sm:$0xff]
    %v72 = vld [vmem:[%s5 + $0x58] sm:$0xff]
    %v73 = vld [vmem:[%s5 + $0x60] sm:$0xff]
    %v74 = vld [vmem:[%s5 + $0x68] sm:$0xff]
    %v75 = vld [vmem:[%s5 + $0x70] sm:$0xff]
    %v76 = vld [vmem:[%s5 + $0x78] sm:$0xff]
    %vm77 = vcmask 15360
    %v79 = vsel %vm77, %v61, 0
    %v82 = vsel %vm77, %v62, 0
    %v85 = vsel %vm77, %v63, 0
    %v88 = vsel %vm77, %v64, 0
    %v91 = vsel %vm77, %v65, 0
    %v94 = vsel %vm77, %v66, 0
    %v97 = vsel %vm77, %v67, 0
    %v100 = vsel %vm77, %v68, 0
    %v103 = vsel %vm77, %v69, 0
    %v106 = vsel %vm77, %v70, 0
    %v109 = vsel %vm77, %v71, 0
    %v112 = vsel %vm77, %v72, 0
    %v115 = vsel %vm77, %v73, 0
    %v118 = vsel %vm77, %v74, 0
    %v121 = vsel %vm77, %v75, 0
    %v124 = vsel %vm77, %v76, 0
    %vm126 = vcmask 1041408
    %v128 = vsel %vm126, %v60, 0
    %130 = vmatpush.msra.mxu0 0.0
    %131 = vmatpush.msra.mxu0 0.0
    %132 = vmatpush.msra.mxu0 0.0
    %133 = vmatpush.msra.mxu0 0.0
    %134 = vmatpush.msra.mxu0 0.0
    %135 = vmatpush.msra.mxu0 0.0
    %136 = vmatpush.msra.mxu0 0.0
    %137 = vmatpush.msra.mxu0 0.0
    %138 = vmatpush.msra.mxu0 0.0
    %139 = vmatpush.msra.mxu0 0.0
    %140 = vmatpush.msra.mxu0 0.0
    %141 = vmatpush.msra.mxu0 0.0
    %142 = vmatpush.msra.mxu0 0.0
    %143 = vmatpush.msra.mxu0 0.0
    %144 = vmatpush.msra.mxu0 0.0
    %145 = vmatpush.msra.mxu0 %v128
    %146 = vmatmul.f32.gmra.mxu0 %v79
    %v147 = vpop.f32.mrf.mxu0
    %v148 = vadd.f32 0.0, %v147
    %149 = vmatmul.f32.gmra.mxu0 %v82
    %v150 = vpop.f32.mrf.mxu0
    %v151 = vadd.f32 0.0, %v150
    %152 = vmatmul.f32.gmra.mxu0 %v85
    %v153 = vpop.f32.mrf.mxu0
    %v154 = vadd.f32 0.0, %v153
    %155 = vmatmul.f32.gmra.mxu0 %v88
    %v156 = vpop.f32.mrf.mxu0
    %v157 = vadd.f32 0.0, %v156
    %158 = vmatmul.f32.gmra.mxu0 %v91
    %v159 = vpop.f32.mrf.mxu0
    %v160 = vadd.f32 0.0, %v159
    %161 = vmatmul.f32.gmra.mxu0 %v94
    %v162 = vpop.f32.mrf.mxu0
    %v163 = vadd.f32 0.0, %v162
    %164 = vmatmul.f32.gmra.mxu0 %v97
    %v165 = vpop.f32.mrf.mxu0
    %v166 = vadd.f32 0.0, %v165
    %167 = vmatmul.f32.gmra.mxu0 %v100
    %v168 = vpop.f32.mrf.mxu0
    %v169 = vadd.f32 0.0, %v168
    %170 = vmatmul.f32.gmra.mxu0 %v103
    %v171 = vpop.f32.mrf.mxu0
    %v172 = vadd.f32 0.0, %v171
    %173 = vmatmul.f32.gmra.mxu0 %v106
    %v174 = vpop.f32.mrf.mxu0
    %v175 = vadd.f32 0.0, %v174
    %176 = vmatmul.f32.gmra.mxu0 %v109
    %v177 = vpop.f32.mrf.mxu0
    %v178 = vadd.f32 0.0, %v177
    %179 = vmatmul.f32.gmra.mxu0 %v112
    %v180 = vpop.f32.mrf.mxu0
    %v181 = vadd.f32 0.0, %v180
    %182 = vmatmul.f32.gmra.mxu0 %v115
    %v183 = vpop.f32.mrf.mxu0
    %v184 = vadd.f32 0.0, %v183
    %185 = vmatmul.f32.gmra.mxu0 %v118
    %v186 = vpop.f32.mrf.mxu0
    %v187 = vadd.f32 0.0, %v186
    %188 = vmatmul.f32.gmra.mxu0 %v121
    %v189 = vpop.f32.mrf.mxu0
    %v190 = vadd.f32 0.0, %v189
    %191 = vmatmul.f32.gmra.mxu0 %v124
    %v192 = vpop.f32.mrf.mxu0
    %v193 = vadd.f32 0.0, %v192
    %194 = vdwg.mxu0
    %v195 = vmul.f32 %v148, 0.5
    %v196 = vmul.f32 %v151, 0.5
    %v197 = vmul.f32 %v154, 0.5
    %v198 = vmul.f32 %v157, 0.5
    %v199 = vmul.f32 %v160, 0.5
    %v200 = vmul.f32 %v163, 0.5
    %v201 = vmul.f32 %v166, 0.5
    %v202 = vmul.f32 %v169, 0.5
    %v203 = vmul.f32 %v172, 0.5
    %v204 = vmul.f32 %v175, 0.5
    %v205 = vmul.f32 %v178, 0.5
    %v206 = vmul.f32 %v181, 0.5
    %v207 = vmul.f32 %v184, 0.5
    %v208 = vmul.f32 %v187, 0.5
    %v209 = vmul.f32 %v190, 0.5
    %v210 = vmul.f32 %v193, 0.5
    %vm211 = vcmask 31744
    %v213 = vsel %vm211, %v44, 0
    %v216 = vsel %vm211, %v45, 0
    %v219 = vsel %vm211, %v46, 0
    %v222 = vsel %vm211, %v47, 0
    %v225 = vsel %vm211, %v48, 0
    %v228 = vsel %vm211, %v49, 0
    %v231 = vsel %vm211, %v50, 0
    %v234 = vsel %vm211, %v51, 0
    %v237 = vsel %vm211, %v52, 0
    %v240 = vsel %vm211, %v53, 0
    %v243 = vsel %vm211, %v54, 0
    %v246 = vsel %vm211, %v55, 0
    %v249 = vsel %vm211, %v56, 0
    %v252 = vsel %vm211, %v57, 0
    %v255 = vsel %vm211, %v58, 0
    %v258 = vsel %vm211, %v59, 0
    %vm260 = vcmask 1043456
    %v262 = vsel %vm260, %v43, 0
    %264 = vmatpush.msra.mxu0 0.0
    %265 = vmatpush.msra.mxu0 0.0
    %266 = vmatpush.msra.mxu0 0.0
    %267 = vmatpush.msra.mxu0 0.0
    %268 = vmatpush.msra.mxu0 0.0
    %269 = vmatpush.msra.mxu0 0.0
    %270 = vmatpush.msra.mxu0 0.0
    %271 = vmatpush.msra.mxu0 0.0
    %272 = vmatpush.msra.mxu0 0.0
    %273 = vmatpush.msra.mxu0 0.0
    %274 = vmatpush.msra.mxu0 0.0
    %275 = vmatpush.msra.mxu0 0.0
    %276 = vmatpush.msra.mxu0 0.0
    %277 = vmatpush.msra.mxu0 0.0
    %278 = vmatpush.msra.mxu0 0.0
    %279 = vmatpush.msra.mxu0 %v262
    %280 = vmatmul.f32.gmra.mxu0 %v213
    %v281 = vpop.f32.mrf.mxu0
    %v282 = vadd.f32 0.0, %v281
    %283 = vmatmul.f32.gmra.mxu0 %v216
    %v284 = vpop.f32.mrf.mxu0
    %v285 = vadd.f32 0.0, %v284
    %286 = vmatmul.f32.gmra.mxu0 %v219
    %v287 = vpop.f32.mrf.mxu0
    %v288 = vadd.f32 0.0, %v287
    %289 = vmatmul.f32.gmra.mxu0 %v222
    %v290 = vpop.f32.mrf.mxu0
    %v291 = vadd.f32 0.0, %v290
    %292 = vmatmul.f32.gmra.mxu0 %v225
    %v293 = vpop.f32.mrf.mxu0
    %v294 = vadd.f32 0.0, %v293
    %295 = vmatmul.f32.gmra.mxu0 %v228
    %v296 = vpop.f32.mrf.mxu0
    %v297 = vadd.f32 0.0, %v296
    %298 = vmatmul.f32.gmra.mxu0 %v231
    %v299 = vpop.f32.mrf.mxu0
    %v300 = vadd.f32 0.0, %v299
    %301 = vmatmul.f32.gmra.mxu0 %v234
    %v302 = vpop.f32.mrf.mxu0
    %v303 = vadd.f32 0.0, %v302
    %304 = vmatmul.f32.gmra.mxu0 %v237
    %v305 = vpop.f32.mrf.mxu0
    %v306 = vadd.f32 0.0, %v305
    %307 = vmatmul.f32.gmra.mxu0 %v240
    %v308 = vpop.f32.mrf.mxu0
    %v309 = vadd.f32 0.0, %v308
    %310 = vmatmul.f32.gmra.mxu0 %v243
    %v311 = vpop.f32.mrf.mxu0
    %v312 = vadd.f32 0.0, %v311
    %313 = vmatmul.f32.gmra.mxu0 %v246
    %v314 = vpop.f32.mrf.mxu0
    %v315 = vadd.f32 0.0, %v314
    %316 = vmatmul.f32.gmra.mxu0 %v249
    %v317 = vpop.f32.mrf.mxu0
    %v318 = vadd.f32 0.0, %v317
    %319 = vmatmul.f32.gmra.mxu0 %v252
    %v320 = vpop.f32.mrf.mxu0
    %v321 = vadd.f32 0.0, %v320
    %322 = vmatmul.f32.gmra.mxu0 %v255
    %v323 = vpop.f32.mrf.mxu0
    %v324 = vadd.f32 0.0, %v323
    %325 = vmatmul.f32.gmra.mxu0 %v258
    %v326 = vpop.f32.mrf.mxu0
    %v327 = vadd.f32 0.0, %v326
    %328 = vdwg.mxu0
    %v329 = vmul.f32 %v282, 0.25
    %v330 = vmul.f32 %v285, 0.25
    %v331 = vmul.f32 %v288, 0.25
    %v332 = vmul.f32 %v291, 0.25
    %v333 = vmul.f32 %v294, 0.25
    %v334 = vmul.f32 %v297, 0.25
    %v335 = vmul.f32 %v300, 0.25
    %v336 = vmul.f32 %v303, 0.25
    %v337 = vmul.f32 %v306, 0.25
    %v338 = vmul.f32 %v309, 0.25
    %v339 = vmul.f32 %v312, 0.25
    %v340 = vmul.f32 %v315, 0.25
    %v341 = vmul.f32 %v318, 0.25
    %v342 = vmul.f32 %v321, 0.25
    %v343 = vmul.f32 %v324, 0.25
    %v344 = vmul.f32 %v327, 0.25
    %v345 = vmul.f32 %v27, %v195
    %v346 = vmul.f32 %v28, %v196
    %v347 = vmul.f32 %v29, %v197
    %v348 = vmul.f32 %v30, %v198
    %v349 = vmul.f32 %v31, %v199
    %v350 = vmul.f32 %v32, %v200
    %v351 = vmul.f32 %v33, %v201
    %v352 = vmul.f32 %v34, %v202
    %v353 = vmul.f32 %v35, %v203
    %v354 = vmul.f32 %v36, %v204
    %v355 = vmul.f32 %v37, %v205
    %v356 = vmul.f32 %v38, %v206
    %v357 = vmul.f32 %v39, %v207
    %v358 = vmul.f32 %v40, %v208
    %v359 = vmul.f32 %v41, %v209
    %v360 = vmul.f32 %v42, %v210
    %v361 = vadd.f32 %v345, %v329
    %v362 = vadd.f32 %v346, %v330
    %v363 = vadd.f32 %v347, %v331
    %v364 = vadd.f32 %v348, %v332
    %v365 = vadd.f32 %v349, %v333
    %v366 = vadd.f32 %v350, %v334
    %v367 = vadd.f32 %v351, %v335
    %v368 = vadd.f32 %v352, %v336
    %v369 = vadd.f32 %v353, %v337
    %v370 = vadd.f32 %v354, %v338
    %v371 = vadd.f32 %v355, %v339
    %v372 = vadd.f32 %v356, %v340
    %v373 = vadd.f32 %v357, %v341
    %v374 = vadd.f32 %v358, %v342
    %v375 = vadd.f32 %v359, %v343
    %v376 = vadd.f32 %v360, %v344
    %v377 = vld [vmem:[%s0] sm:$0xff]
    %v378 = vld [vmem:[%s0 + $0x8] sm:$0xff]
    %v379 = vld [vmem:[%s0 + $0x10] sm:$0xff]
    %v380 = vld [vmem:[%s0 + $0x18] sm:$0xff]
    %v381 = vld [vmem:[%s0 + $0x20] sm:$0xff]
    %v382 = vld [vmem:[%s0 + $0x28] sm:$0xff]
    %v383 = vld [vmem:[%s0 + $0x30] sm:$0xff]
    %v384 = vld [vmem:[%s0 + $0x38] sm:$0xff]
    %v385 = vld [vmem:[%s0 + $0x40] sm:$0xff]
    %v386 = vld [vmem:[%s0 + $0x48] sm:$0xff]
    %v387 = vld [vmem:[%s0 + $0x50] sm:$0xff]
    %v388 = vld [vmem:[%s0 + $0x58] sm:$0xff]
    %v389 = vld [vmem:[%s0 + $0x60] sm:$0xff]
    %v390 = vld [vmem:[%s0 + $0x68] sm:$0xff]
    %v391 = vld [vmem:[%s0 + $0x70] sm:$0xff]
    %v392 = vld [vmem:[%s0 + $0x78] sm:$0xff]
    %v393 = vld [vmem:[%s6] sm:$0x1]
    %v395 = vperm.slane %v393, 0
    %397 = vmatpush.xpose.msra.mxu0 %v376
    %398 = vmatpush.xpose.msra.mxu0 %v375
    %399 = vmatpush.xpose.msra.mxu0 %v374
    %400 = vmatpush.xpose.msra.mxu0 %v373
    %401 = vmatpush.xpose.msra.mxu0 %v372
    %402 = vmatpush.xpose.msra.mxu0 %v371
    %403 = vmatpush.xpose.msra.mxu0 %v370
    %404 = vmatpush.xpose.msra.mxu0 %v369
    %405 = vmatpush.xpose.msra.mxu0 %v368
    %406 = vmatpush.xpose.msra.mxu0 %v367
    %407 = vmatpush.xpose.msra.mxu0 %v366
    %408 = vmatpush.xpose.msra.mxu0 %v365
    %409 = vmatpush.xpose.msra.mxu0 %v364
    %410 = vmatpush.xpose.msra.mxu0 %v363
    %411 = vmatpush.xpose.msra.mxu0 %v362
    %412 = vmatpush.xpose.msra.mxu0 %v361
    %413 = vmatmul.f32.gmra.mxu0 %v377
    %v414 = vpop.f32.mrf.mxu0
    %v415 = vadd.f32 %v395, %v414
    %416 = vmatmul.f32.gmra.mxu0 %v378
    %v417 = vpop.f32.mrf.mxu0
    %v418 = vadd.f32 %v395, %v417
    %419 = vmatmul.f32.gmra.mxu0 %v379
    %v420 = vpop.f32.mrf.mxu0
    %v421 = vadd.f32 %v395, %v420
    %422 = vmatmul.f32.gmra.mxu0 %v380
    %v423 = vpop.f32.mrf.mxu0
    %v424 = vadd.f32 %v395, %v423
    %425 = vmatmul.f32.gmra.mxu0 %v381
    %v426 = vpop.f32.mrf.mxu0
    %v427 = vadd.f32 %v395, %v426
    %428 = vmatmul.f32.gmra.mxu0 %v382
    %v429 = vpop.f32.mrf.mxu0
    %v430 = vadd.f32 %v395, %v429
    %431 = vmatmul.f32.gmra.mxu0 %v383
    %v432 = vpop.f32.mrf.mxu0
    %v433 = vadd.f32 %v395, %v432
    %434 = vmatmul.f32.gmra.mxu0 %v384
    %v435 = vpop.f32.mrf.mxu0
    %v436 = vadd.f32 %v395, %v435
    %437 = vmatmul.f32.gmra.mxu0 %v385
    %v438 = vpop.f32.mrf.mxu0
    %v439 = vadd.f32 %v395, %v438
    %440 = vmatmul.f32.gmra.mxu0 %v386
    %v441 = vpop.f32.mrf.mxu0
    %v442 = vadd.f32 %v395, %v441
    %443 = vmatmul.f32.gmra.mxu0 %v387
    %v444 = vpop.f32.mrf.mxu0
    %v445 = vadd.f32 %v395, %v444
    %446 = vmatmul.f32.gmra.mxu0 %v388
    %v447 = vpop.f32.mrf.mxu0
    %v448 = vadd.f32 %v395, %v447
    %449 = vmatmul.f32.gmra.mxu0 %v389
    %v450 = vpop.f32.mrf.mxu0
    %v451 = vadd.f32 %v395, %v450
    %452 = vmatmul.f32.gmra.mxu0 %v390
    %v453 = vpop.f32.mrf.mxu0
    %v454 = vadd.f32 %v395, %v453
    %455 = vmatmul.f32.gmra.mxu0 %v391
    %v456 = vpop.f32.mrf.mxu0
    %v457 = vadd.f32 %v395, %v456
    %458 = vmatmul.f32.gmra.mxu0 %v392
    %v459 = vpop.f32.mrf.mxu0
    %v460 = vadd.f32 %v395, %v459
    %461 = vdwg.mxu0
    %462 = vst [vmem:[#allocation2] sm:$0xff] %v415
    %463 = vst [vmem:[#allocation2 + $0x8] sm:$0xff] %v418
    %464 = vst [vmem:[#allocation2 + $0x10] sm:$0xff] %v421
    %465 = vst [vmem:[#allocation2 + $0x18] sm:$0xff] %v424
    %466 = vst [vmem:[#allocation2 + $0x20] sm:$0xff] %v427
    %467 = vst [vmem:[#allocation2 + $0x28] sm:$0xff] %v430
    %468 = vst [vmem:[#allocation2 + $0x30] sm:$0xff] %v433
    %469 = vst [vmem:[#allocation2 + $0x38] sm:$0xff] %v436
    %470 = vst [vmem:[#allocation2 + $0x40] sm:$0xff] %v439
    %471 = vst [vmem:[#allocation2 + $0x48] sm:$0xff] %v442
    %472 = vst [vmem:[#allocation2 + $0x50] sm:$0xff] %v445
    %473 = vst [vmem:[#allocation2 + $0x58] sm:$0xff] %v448
    %474 = vst [vmem:[#allocation2 + $0x60] sm:$0xff] %v451
    %475 = vst [vmem:[#allocation2 + $0x68] sm:$0xff] %v454
    %476 = vst [vmem:[#allocation2 + $0x70] sm:$0xff] %v457
    %477 = vst [vmem:[#allocation2 + $0x78] sm:$0xff] %v460
    // Predicated region
    $region30: #{tpu_custom_call.1} parent=1 // pred_check
      _
    $region31: #{tpu_custom_call.1} parent=1 // pred_check_branch
      %479 = sbr.rel (0) target = $region33
    $region32: #{tpu_custom_call.1} parent=1 // pred_region
      %481 = vsyncadd [#allocation3], 0
      %s482 = sshll.u32 [#allocation2], 4
      %s483 = int_to_ptr.vmem [resolvable:$true] %s482
      %s484 = sshll.u32 %s7, 4
      %s485 = int_to_ptr.hbm [resolvable:$true] %s484
      %490 = dma.vmem_to_hbm [thread:$0]  %s483, 2048, %s485, [#allocation3], 128, 128, 8
    $region33: #{tpu_custom_call.1} parent=1 // pred_fallthru
      _
    // Predicated region
    $region34: #{tpu_custom_call.1} parent=1 // pred_check
      _
    $region35: #{tpu_custom_call.1} parent=1 // pred_check_branch
      %492 = sbr.rel (0) target = $region37
    $region36: #{tpu_custom_call.1} parent=1 // pred_region
      %494 = dma.done [#allocation3], 2048
    $region37: #{tpu_custom_call.1} parent=1 // pred_fallthru
      _
    %495 = vsyncpa [#allocation3], 1

</llo_original>
